<compile_context>
chip_gen: v5e
topology: v5e:2x2
jax: 0.10.0
libtpu: 0.0.40
codegen_flags: <defaults>
</compile_context>

<pallas_src>
import functools

import jax
import jax.numpy as jnp
from jax.experimental import pallas as pl
from jax.experimental.pallas import tpu as pltpu


# ------------------------------ fused kernel --------------------------------
def _lstm_cell_kernel(x_ref, h_ref, c_ref, w_ref, b_ref,
                      h_out_ref, c_out_ref, *, hidden):
    H = hidden

    # In-kernel bf16 cast of the activations (cheap VPU work, hidden under the
    # weight DMA; halves x/h HBM traffic vs. a wrapper-side cast).
    x_b = x_ref[...].astype(jnp.bfloat16)
    h_b = h_ref[...].astype(jnp.bfloat16)

    # Two MXU pushes accumulating into the same f32 result -- replaces the
    # lane-axis concat + single K=2H dot (no (TB, 2H) VMEM copy).
    gates = (jnp.dot(x_b, w_ref[:H, :], preferred_element_type=jnp.float32)
             + jnp.dot(h_b, w_ref[H:, :], preferred_element_type=jnp.float32)
             + b_ref[...])                                    # (TB, 4H) f32

    f_t = jax.nn.sigmoid(gates[:, 0 * H:1 * H])
    i_t = jax.nn.sigmoid(gates[:, 1 * H:2 * H])
    o_t = jax.nn.sigmoid(gates[:, 2 * H:3 * H])
    g_t = jnp.tanh(gates[:, 3 * H:4 * H])

    c_prev = c_ref[...]                                       # f32
    c_t = f_t * c_prev + i_t * g_t
    h_t = o_t * jnp.tanh(c_t)

    h_out_ref[...] = h_t.astype(h_out_ref.dtype)
    c_out_ref[...] = c_t.astype(c_out_ref.dtype)


# ----------------------------- helpers / wrapper -----------------------------
def pack_lstm_gate_params(w_f, b_f, w_i, b_i, w_o, b_o, w_g, b_g):
    """Pack the module's four nn.Linear(2H, H) into the fused kernel layout.

    Each w_* must be (2H, H) (i.e. torch `linear.weight.T`), each b_* is (H,).
    Returns (w_fused (2H, 4H) bf16, b_fused (4H,) f32) with column order
    [forget | input | output | hidden(g)].  Do this ONCE (outside the per-step
    call) so the weight is stored/fetched in bf16, never re-cast per call.
    """
    w_fused = jnp.concatenate([w_f, w_i, w_o, w_g], axis=1).astype(jnp.bfloat16)
    b_fused = jnp.concatenate([b_f, b_i, b_o, b_g], axis=0).astype(jnp.float32)
    return w_fused, b_fused


def _pick_block_b(B):
    if B < 32:
        return B                       # single block; extra W fetch not worth it
    tb = pl.cdiv(B, 2)                 # >= 2 parallel blocks -> both v7x TCs
    tb = ((tb + 15) // 16) * 16        # multiple of 16: bf16 sublane packing
    return min(512, tb)


def _vmem_limit_bytes(block_b, H):
    act = block_b * H * 4                       # one f32 activation tile
    w = (2 * H) * (4 * H) * 2                   # bf16 fused weight
    bias = 4 * H * 4
    # 3 input tiles + 2 output tiles + W + b, double-buffered, plus headroom
    # for the f32 gate intermediates.
    est = 2 * (5 * act + w + bias) + 6 * block_b * 4 * H * 4 + (4 << 20)
    return int(min(max(est, 32 << 20), 64 << 20))


def lstm_cell_forward(x, h, c, w_gates_bf16, b_gates, *, block_b=None):
    """x, h, c: (B, H) f32.  w_gates_bf16: (2H, 4H) bf16 fused [f|i|o|g]
    weights (see pack_lstm_gate_params).  b_gates: (4H,) f32 fused biases.
    Returns (h_t, c_t), both (B, H) f32."""
    B, H = x.shape
    assert H % 8 == 0, "hidden_size must be a multiple of 8"
    assert w_gates_bf16.shape == (2 * H, 4 * H)
    assert w_gates_bf16.dtype == jnp.bfloat16
    if block_b is None:
        block_b = _pick_block_b(B)
    grid = (pl.cdiv(B, block_b),)

    b2 = b_gates.reshape(1, 4 * H).astype(jnp.float32)
    c_f = c.astype(jnp.float32)

    kernel = functools.partial(_lstm_cell_kernel, hidden=H)
    h_t, c_t = pl.pallas_call(
        kernel,
        out_shape=(jax.ShapeDtypeStruct((B, H), jnp.float32),
                   jax.ShapeDtypeStruct((B, H), jnp.float32)),
        grid=grid,
        in_specs=[
            pl.BlockSpec((block_b, H), lambda i: (i, 0)),       # x  (f32)
            pl.BlockSpec((block_b, H), lambda i: (i, 0)),       # h  (f32)
            pl.BlockSpec((block_b, H), lambda i: (i, 0)),       # c  (f32)
            pl.BlockSpec((2 * H, 4 * H), lambda i: (0, 0)),     # fused W (bf16)
            pl.BlockSpec((1, 4 * H), lambda i: (0, 0)),         # fused b (f32)
        ],
        out_specs=(pl.BlockSpec((block_b, H), lambda i: (i, 0)),
                   pl.BlockSpec((block_b, H), lambda i: (i, 0))),
        compiler_params=pltpu.CompilerParams(
            dimension_semantics=("parallel",),
            vmem_limit_bytes=_vmem_limit_bytes(block_b, H)),
    )(x, h, c_f, w_gates_bf16, b2)
    return h_t, c_t


# -------------------------- pure-JAX f32 reference ---------------------------
def reference_lstm_cell(x, h, c, w_f, b_f, w_i, b_i, w_o, b_o, w_g, b_g):
    xh = jnp.concatenate([x, h], axis=1)
    f_t = jax.nn.sigmoid(xh @ w_f + b_f)
    i_t = jax.nn.sigmoid(xh @ w_i + b_i)
    o_t = jax.nn.sigmoid(xh @ w_o + b_o)
    g_t = jnp.tanh(xh @ w_g + b_g)
    c_t = f_t * c + i_t * g_t
    h_t = o_t * jnp.tanh(c_t)
    return h_t, c_t


# ---------------------------------- main -------------------------------------
if __name__ == "__main__":
    key = jax.random.PRNGKey(0)
    ks = jax.random.split(key, 11)

    B, H = 16, 32          # small example; B multiple of 16, H multiple of 8

    x = jax.random.normal(ks[0], (B, H), jnp.float32)
    h = jax.random.normal(ks[1], (B, H), jnp.float32)
    c = jax.random.normal(ks[2], (B, H), jnp.float32)

    scale = 1.0 / (2 * H) ** 0.5
    w_f = jax.random.normal(ks[3], (2 * H, H), jnp.float32) * scale
    w_i = jax.random.normal(ks[4], (2 * H, H), jnp.float32) * scale
    w_o = jax.random.normal(ks[5], (2 * H, H), jnp.float32) * scale
    w_g = jax.random.normal(ks[6], (2 * H, H), jnp.float32) * scale
    b_f = jax.random.normal(ks[7], (H,), jnp.float32) * 0.1
    b_i = jax.random.normal(ks[8], (H,), jnp.float32) * 0.1
    b_o = jax.random.normal(ks[9], (H,), jnp.float32) * 0.1
    b_g = jax.random.normal(ks[10], (H,), jnp.float32) * 0.1

    # One-time bf16 packing of the fused weight (outside the per-step call).
    w_fused, b_fused = pack_lstm_gate_params(w_f, b_f, w_i, b_i, w_o, b_o, w_g, b_g)

    h_t, c_t = jax.block_until_ready(
        lstm_cell_forward(x, h, c, w_fused, b_fused))
    h_ref, c_ref = jax.block_until_ready(
        reference_lstm_cell(x, h, c, w_f, b_f, w_i, b_i, w_o, b_o, w_g, b_g))

    assert jnp.all(jnp.isfinite(h_t)) and jnp.all(jnp.isfinite(c_t))
    # bf16 matmul operands vs. pure-f32 reference -> ~1e-2 level deviation.
    assert jnp.allclose(h_t, h_ref, rtol=2e-2, atol=2e-2), \
        float(jnp.max(jnp.abs(h_t - h_ref)))
    assert jnp.allclose(c_t, c_ref, rtol=2e-2, atol=2e-2), \
        float(jnp.max(jnp.abs(c_t - c_ref)))
    print("KERNEL_OK")
</pallas_src>

<mosaic_0001>
module attributes {stable_mosaic.version = 11 : i64} {
  func.func @_lstm_cell_kernel(%arg0: i32, %arg1: memref<16x32xf32, #tpu.memory_space<vmem>>, %arg2: memref<16x32xf32, #tpu.memory_space<vmem>>, %arg3: memref<16x32xf32, #tpu.memory_space<vmem>>, %arg4: memref<64x128xbf16, #tpu.memory_space<vmem>>, %arg5: memref<1x128xf32, #tpu.memory_space<vmem>>, %arg6: memref<16x32xf32, #tpu.memory_space<vmem>>, %arg7: memref<16x32xf32, #tpu.memory_space<vmem>>) attributes {dimension_semantics = [#tpu.dimension_semantics<parallel>], iteration_bounds = array<i64: 1>, scalar_prefetch = 0 : i64, scratch_operands = 0 : i64, tpu.core_type = #tpu.core_type<tc>, window_params = [{transform_indices = @transform_0, window_bounds = array<i64: 16, 32>}, {transform_indices = @transform_1, window_bounds = array<i64: 16, 32>}, {transform_indices = @transform_2, window_bounds = array<i64: 16, 32>}, {pipeline_mode = #tpu.pipeline_mode<synchronous>, transform_indices = @transform_3, window_bounds = array<i64: 64, 128>}, {pipeline_mode = #tpu.pipeline_mode<synchronous>, transform_indices = @transform_4, window_bounds = array<i64: 1, 128>}, {transform_indices = @transform_5, window_bounds = array<i64: 16, 32>}, {transform_indices = @transform_6, window_bounds = array<i64: 16, 32>}]} {
    %c0 = arith.constant 0 : index
    %c0_0 = arith.constant 0 : index
    %0 = vector.load %arg1[%c0, %c0_0] : memref<16x32xf32, #tpu.memory_space<vmem>>, vector<16x32xf32>
    %1 = arith.truncf %0 : vector<16x32xf32> to vector<16x32xbf16>
    %c0_1 = arith.constant 0 : index
    %c0_2 = arith.constant 0 : index
    %2 = vector.load %arg2[%c0_1, %c0_2] : memref<16x32xf32, #tpu.memory_space<vmem>>, vector<16x32xf32>
    %3 = arith.truncf %2 : vector<16x32xf32> to vector<16x32xbf16>
    %c0_3 = arith.constant 0 : index
    %c0_4 = arith.constant 0 : index
    %4 = vector.load %arg4[%c0_3, %c0_4] : memref<64x128xbf16, #tpu.memory_space<vmem>>, vector<32x128xbf16>
    %cst = arith.constant dense<0.000000e+00> : vector<16x128xf32>
    %5 = tpu.matmul %1, %4, %cst {dimension_numbers = #tpu.dot_dimension_numbers<[1], [0], [0], [1], [0, 0, 1, 1], [], []>} : vector<16x32xbf16>, vector<32x128xbf16>, vector<16x128xf32> -> vector<16x128xf32>
    %c32 = arith.constant 32 : index
    %c0_5 = arith.constant 0 : index
    %6 = vector.load %arg4[%c32, %c0_5] : memref<64x128xbf16, #tpu.memory_space<vmem>>, vector<32x128xbf16>
    %cst_6 = arith.constant dense<0.000000e+00> : vector<16x128xf32>
    %7 = tpu.matmul %3, %6, %cst_6 {dimension_numbers = #tpu.dot_dimension_numbers<[1], [0], [0], [1], [0, 0, 1, 1], [], []>} : vector<16x32xbf16>, vector<32x128xbf16>, vector<16x128xf32> -> vector<16x128xf32>
    %8 = arith.addf %5, %7 : vector<16x128xf32>
    %c0_7 = arith.constant 0 : index
    %c0_8 = arith.constant 0 : index
    %9 = vector.load %arg5[%c0_7, %c0_8] : memref<1x128xf32, #tpu.memory_space<vmem>>, vector<1x128xf32>
    %10 = vector.broadcast %9 : vector<1x128xf32> to vector<16x128xf32>
    %11 = arith.addf %8, %10 : vector<16x128xf32>
    %12 = vector.extract_strided_slice %11 {offsets = [0, 0], sizes = [16, 32], strides = [1, 1]} : vector<16x128xf32> to vector<16x32xf32>
    %13 = arith.negf %12 : vector<16x32xf32>
    %14 = math.exp %13 : vector<16x32xf32>
    %cst_9 = arith.constant 1.000000e+00 : f32
    %15 = vector.broadcast %cst_9 : f32 to vector<16x32xf32>
    %16 = arith.addf %15, %14 : vector<16x32xf32>
    %17 = arith.divf %15, %16 : vector<16x32xf32>
    %18 = vector.extract_strided_slice %11 {offsets = [0, 32], sizes = [16, 32], strides = [1, 1]} : vector<16x128xf32> to vector<16x32xf32>
    %19 = arith.negf %18 : vector<16x32xf32>
    %20 = math.exp %19 : vector<16x32xf32>
    %cst_10 = arith.constant 1.000000e+00 : f32
    %21 = vector.broadcast %cst_10 : f32 to vector<16x32xf32>
    %22 = arith.addf %21, %20 : vector<16x32xf32>
    %23 = arith.divf %21, %22 : vector<16x32xf32>
    %24 = vector.extract_strided_slice %11 {offsets = [0, 64], sizes = [16, 32], strides = [1, 1]} : vector<16x128xf32> to vector<16x32xf32>
    %25 = arith.negf %24 : vector<16x32xf32>
    %26 = math.exp %25 : vector<16x32xf32>
    %cst_11 = arith.constant 1.000000e+00 : f32
    %27 = vector.broadcast %cst_11 : f32 to vector<16x32xf32>
    %28 = arith.addf %27, %26 : vector<16x32xf32>
    %29 = arith.divf %27, %28 : vector<16x32xf32>
    %30 = vector.extract_strided_slice %11 {offsets = [0, 96], sizes = [16, 32], strides = [1, 1]} : vector<16x128xf32> to vector<16x32xf32>
    %31 = math.tanh %30 : vector<16x32xf32>
    %c0_12 = arith.constant 0 : index
    %c0_13 = arith.constant 0 : index
    %32 = vector.load %arg3[%c0_12, %c0_13] : memref<16x32xf32, #tpu.memory_space<vmem>>, vector<16x32xf32>
    %33 = arith.mulf %17, %32 : vector<16x32xf32>
    %34 = arith.mulf %23, %31 : vector<16x32xf32>
    %35 = arith.addf %33, %34 : vector<16x32xf32>
    %36 = math.tanh %35 : vector<16x32xf32>
    %37 = arith.mulf %29, %36 : vector<16x32xf32>
    %c0_14 = arith.constant 0 : index
    %c0_15 = arith.constant 0 : index
    %38 = vector.load %arg6[%c0_14, %c0_15] : memref<16x32xf32, #tpu.memory_space<vmem>>, vector<16x32xf32>
    tpu.vector_store %arg6[%c0_14, %c0_15], %37 {strides = array<i32>} : memref<16x32xf32, #tpu.memory_space<vmem>>, vector<16x32xf32>,
    %c0_16 = arith.constant 0 : index
    %c0_17 = arith.constant 0 : index
    %39 = vector.load %arg7[%c0_16, %c0_17] : memref<16x32xf32, #tpu.memory_space<vmem>>, vector<16x32xf32>
    tpu.vector_store %arg7[%c0_16, %c0_17], %35 {strides = array<i32>} : memref<16x32xf32, #tpu.memory_space<vmem>>, vector<16x32xf32>,
    return
  }
  func.func @transform_0(%arg0: i32) -> (i32, i32) {
    %c0_i32 = arith.constant 0 : i32
    %c0_i32_0 = arith.constant 0 : i32
    return %arg0, %c0_i32 : i32, i32
  }
  func.func @transform_1(%arg0: i32) -> (i32, i32) {
    %c0_i32 = arith.constant 0 : i32
    %c0_i32_0 = arith.constant 0 : i32
    return %arg0, %c0_i32 : i32, i32
  }
  func.func @transform_2(%arg0: i32) -> (i32, i32) {
    %c0_i32 = arith.constant 0 : i32
    %c0_i32_0 = arith.constant 0 : i32
    return %arg0, %c0_i32 : i32, i32
  }
  func.func @transform_3(%arg0: i32) -> (i32, i32) {
    %c0_i32 = arith.constant 0 : i32
    %c0_i32_0 = arith.constant 0 : i32
    %c0_i32_1 = arith.constant 0 : i32
    return %c0_i32, %c0_i32_0 : i32, i32
  }
  func.func @transform_4(%arg0: i32) -> (i32, i32) {
    %c0_i32 = arith.constant 0 : i32
    %c0_i32_0 = arith.constant 0 : i32
    %c0_i32_1 = arith.constant 0 : i32
    return %c0_i32, %c0_i32_0 : i32, i32
  }
  func.func @transform_5(%arg0: i32) -> (i32, i32) {
    %c0_i32 = arith.constant 0 : i32
    %c0_i32_0 = arith.constant 0 : i32
    return %arg0, %c0_i32 : i32, i32
  }
  func.func @transform_6(%arg0: i32) -> (i32, i32) {
    %c0_i32 = arith.constant 0 : i32
    %c0_i32_0 = arith.constant 0 : i32
    return %arg0, %c0_i32 : i32, i32
  }
}

</mosaic_0001>

<llo_original>
// kernel: tpu_custom_call.1
$region0: #{tpu_custom_call.1}
  #allocation0 [shape = 'u32[]', space=smem, size = 0x4, offset = 0x4, fixed_abs, tag = 'smem constant byte address 0x4 - core index']
  #allocation1 [shape = 'u32[72,128]{1,0:T(1,128)}', space=vmem, size = 0x9000, scoped, tag = 'internal scratch']
  %s0 = inlined_call_operand.hbm [shape: f32[16,32], index: 0, kind: input, shape index: {}]
  %s1 = inlined_call_operand.hbm [shape: f32[16,32], index: 1, kind: input, shape index: {}]
  %s2 = inlined_call_operand.hbm [shape: f32[16,32], index: 2, kind: input, shape index: {}]
  %s3 = inlined_call_operand.hbm [shape: bf16[64,128], index: 3, kind: input, shape index: {}]
  %s4 = inlined_call_operand.vmem [shape: f32[1,128], index: 4, kind: input, shape index: {}]
  %s5 = inlined_call_operand.hbm [shape: f32[16,32], index: 5, kind: output, shape index: {0}]
  %s6 = inlined_call_operand.hbm [shape: f32[16,32], index: 6, kind: output, shape index: {1}]
  %7 = xla_tuple %s5, %s6
  %s8 = sld [smem:[#allocation0]]
  $region54: #{tpu_custom_call.1} parent=0
    _
  %s10 = ssub.s32 1, %s8
  %s11 = scalar_select 0, %s10, %s8
  $region1: #{tpu_custom_call.1} parent=0
    #allocation2 [shape = 'u8[8192]{0}', space=vmem, size = 0x2000, scoped, tag = 'input window, operand 0, single buffered']
    #allocation3 [shape = 's32[1]{0}', space=sflag, size = 0x4, scoped, tag = 'scoped memory for tpu_custom_call.1']
    #allocation4 [shape = 's32[1]{0}', space=sflag, size = 0x4, scoped, tag = 'scoped memory for tpu_custom_call.1']
    #allocation5 [shape = 'u8[8192]{0}', space=vmem, size = 0x2000, scoped, tag = 'input window, operand 1, single buffered']
    #allocation6 [shape = 's32[1]{0}', space=sflag, size = 0x4, scoped, tag = 'scoped memory for tpu_custom_call.1']
    #allocation7 [shape = 'u8[8192]{0}', space=vmem, size = 0x2000, scoped, tag = 'input window, operand 2, single buffered']
    #allocation8 [shape = 'u8[16384]{0}', space=vmem, size = 0x4000, scoped, tag = 'input window, operand 3, single buffered']
    #allocation9 [shape = 's32[1]{0}', space=sflag, size = 0x4, scoped, tag = 'scoped memory for tpu_custom_call.1']
    #allocation10 [shape = 'u8[8192]{0}', space=vmem, size = 0x2000, scoped, tag = 'output window, operand 0, single buffered']
    #allocation11 [shape = 'u8[8192]{0}', space=vmem, size = 0x2000, scoped, tag = 'output window, operand 1, single buffered']
    #allocation12 [shape = 's32[1]{0}', space=sflag, size = 0x4, scoped, tag = 'scoped memory for tpu_custom_call.1']
    %12 = vsyncpa [#allocation3], 0
    %13 = vsyncpa [#allocation6], 0
    %14 = vsyncpa [#allocation9], 0
    %15 = vsyncpa [#allocation4], 0
    %16 = vsyncpa [#allocation12], 0
    // Predicated region
    $region2: #{tpu_custom_call.1} parent=1 // pred_check
      _
    $region3: #{tpu_custom_call.1} parent=1 // pred_check_branch
      %18 = sbr.rel (0) target = $region5
    $region4: #{tpu_custom_call.1} parent=1 // pred_region
      %20 = vsyncadd [#allocation3], 0
      %s21 = sshll.u32 %s0, 4
      %s22 = int_to_ptr.hbm [resolvable:$true] %s21
      %s23 = sshll.u32 [#allocation2], 4
      %s24 = int_to_ptr.vmem [resolvable:$true] %s23
      %29 = dma.hbm_to_vmem [thread:$0]  %s22, 256, %s24, [#allocation3], 128, 128, 8
    $region5: #{tpu_custom_call.1} parent=1 // pred_fallthru
      _
    // Predicated region
    $region6: #{tpu_custom_call.1} parent=1 // pred_check
      _
    $region7: #{tpu_custom_call.1} parent=1 // pred_check_branch
      %31 = sbr.rel (0) target = $region9
    $region8: #{tpu_custom_call.1} parent=1 // pred_region
      %33 = vsyncadd [#allocation6], 0
      %s34 = sshll.u32 %s1, 4
      %s35 = int_to_ptr.hbm [resolvable:$true] %s34
      %s36 = sshll.u32 [#allocation5], 4
      %s37 = int_to_ptr.vmem [resolvable:$true] %s36
      %42 = dma.hbm_to_vmem [thread:$0]  %s35, 256, %s37, [#allocation6], 128, 128, 8
    $region9: #{tpu_custom_call.1} parent=1 // pred_fallthru
      _
    // Predicated region
    $region10: #{tpu_custom_call.1} parent=1 // pred_check
      _
    $region11: #{tpu_custom_call.1} parent=1 // pred_check_branch
      %44 = sbr.rel (0) target = $region13
    $region12: #{tpu_custom_call.1} parent=1 // pred_region
      %46 = vsyncadd [#allocation6], 0
      %s47 = sshll.u32 %s2, 4
      %s48 = int_to_ptr.hbm [resolvable:$true] %s47
      %s49 = sshll.u32 [#allocation7], 4
      %s50 = int_to_ptr.vmem [resolvable:$true] %s49
      %55 = dma.hbm_to_vmem [thread:$0]  %s48, 256, %s50, [#allocation6], 128, 128, 8
    $region13: #{tpu_custom_call.1} parent=1 // pred_fallthru
      _
    // Predicated region
    $region14: #{tpu_custom_call.1} parent=1 // pred_check
      _
    $region15: #{tpu_custom_call.1} parent=1 // pred_check_branch
      %57 = sbr.rel (0) target = $region17
    $region16: #{tpu_custom_call.1} parent=1 // pred_region
      %59 = vsyncadd [#allocation9], 0
      %s60 = sshll.u32 %s3, 4
      %s61 = int_to_ptr.hbm [resolvable:$true] %s60
      %s62 = sshll.u32 [#allocation8], 4
      %s63 = int_to_ptr.vmem [resolvable:$true] %s62
      %68 = dma.hbm_to_vmem [thread:$0]  %s61, 512, %s63, [#allocation9], 64, 64, 4
    $region17: #{tpu_custom_call.1} parent=1 // pred_fallthru
      _
    // Predicated region
    $region18: #{tpu_custom_call.1} parent=1 // pred_check
      _
    $region19: #{tpu_custom_call.1} parent=1 // pred_check_branch
      %70 = sbr.rel (0) target = $region21
    $region20: #{tpu_custom_call.1} parent=1 // pred_region
      _
    $region21: #{tpu_custom_call.1} parent=1 // pred_fallthru
      _
    // Predicated region
    $region22: #{tpu_custom_call.1} parent=1 // pred_check
      _
    $region23: #{tpu_custom_call.1} parent=1 // pred_check_branch
      %72 = sbr.rel (0) target = $region25
    $region24: #{tpu_custom_call.1} parent=1 // pred_region
      %74 = dma.done [#allocation3], 256
    $region25: #{tpu_custom_call.1} parent=1 // pred_fallthru
      _
    // Predicated region
    $region26: #{tpu_custom_call.1} parent=1 // pred_check
      _
    $region27: #{tpu_custom_call.1} parent=1 // pred_check_branch
      %76 = sbr.rel (0) target = $region29
    $region28: #{tpu_custom_call.1} parent=1 // pred_region
      %78 = dma.done [#allocation6], 256
    $region29: #{tpu_custom_call.1} parent=1 // pred_fallthru
      _
    // Predicated region
    $region30: #{tpu_custom_call.1} parent=1 // pred_check
      _
    $region31: #{tpu_custom_call.1} parent=1 // pred_check_branch
      %80 = sbr.rel (0) target = $region33
    $region32: #{tpu_custom_call.1} parent=1 // pred_region
      %82 = dma.done [#allocation6], 256
    $region33: #{tpu_custom_call.1} parent=1 // pred_fallthru
      _
    // Predicated region
    $region34: #{tpu_custom_call.1} parent=1 // pred_check
      _
    $region35: #{tpu_custom_call.1} parent=1 // pred_check_branch
      %84 = sbr.rel (0) target = $region37
    $region36: #{tpu_custom_call.1} parent=1 // pred_region
      %86 = dma.done [#allocation9], 512
    $region37: #{tpu_custom_call.1} parent=1 // pred_fallthru
      _
    %v88 = vld [vmem:[#allocation2] sm:$0xff]
    %v89 = vld [vmem:[#allocation2 + $0x8] sm:$0xff]
    %v90 = vpack.c.bf16 %v89, %v88
    %v91 = vld [vmem:[#allocation5] sm:$0xff]
    %v92 = vld [vmem:[#allocation5 + $0x8] sm:$0xff]
    %v93 = vpack.c.bf16 %v92, %v91
    %v94 = vld [vmem:[#allocation8] sm:$0xf]
    %v95 = vld [vmem:[#allocation8 + $0x4] sm:$0xf]
    %v96 = vld [vmem:[#allocation8 + $0x8] sm:$0xf]
    %v97 = vld [vmem:[#allocation8 + $0xc] sm:$0xf]
    %v98 = vld [vmem:[#allocation8 + $0x10] sm:$0xf]
    %v99 = vld [vmem:[#allocation8 + $0x14] sm:$0xf]
    %v100 = vld [vmem:[#allocation8 + $0x18] sm:$0xf]
    %v101 = vld [vmem:[#allocation8 + $0x1c] sm:$0xf]
    %v106 = vunpack.c.l.b16 %v98
    %v107 = vunpack.c.l.b16 %v99
    %v108 = vunpack.c.l.b16 %v100
    %v109 = vunpack.c.l.b16 %v101
    %v110 = vpack.c.b16 %v107, %v106
    %v111 = vpack.c.b16 %v109, %v108
    %vm114 = vcmask 261120
    %v116 = vsel %vm114, %v93, 0
    %118 = vmatpush.bf16.msra.mxu0 0
    %119 = vmatpush.bf16.msra.mxu0 0
    %120 = vmatpush.bf16.msra.mxu0 0
    %121 = vmatpush.bf16.msra.mxu0 0
    %122 = vmatpush.bf16.msra.mxu0 0
    %123 = vmatpush.bf16.msra.mxu0 0
    %124 = vmatpush.bf16.msra.mxu0 %v111
    %125 = vmatpush.bf16.msra.mxu0 %v110
    %126 = vmatmul.bf16.gmra.mxu0 %v116
    %v127 = vpop.f32.mrf.mxu0
    %v128 = vadd.f32 0.0, %v127
    %v129 = vpop.f32.mrf.mxu0
    %v130 = vadd.f32 0.0, %v129
    %131 = vdwg.mxu0
    %v136 = vunpack.c.l.b16 %v94
    %v137 = vunpack.c.l.b16 %v95
    %v138 = vunpack.c.l.b16 %v96
    %v139 = vunpack.c.l.b16 %v97
    %v140 = vpack.c.b16 %v137, %v136
    %v141 = vpack.c.b16 %v139, %v138
    %v145 = vsel %vm114, %v90, 0
    %147 = vmatpush.bf16.msra.mxu0 0
    %148 = vmatpush.bf16.msra.mxu0 0
    %149 = vmatpush.bf16.msra.mxu0 0
    %150 = vmatpush.bf16.msra.mxu0 0
    %151 = vmatpush.bf16.msra.mxu0 0
    %152 = vmatpush.bf16.msra.mxu0 0
    %153 = vmatpush.bf16.msra.mxu0 %v141
    %154 = vmatpush.bf16.msra.mxu0 %v140
    %155 = vmatmul.bf16.gmra.mxu0 %v145
    %v156 = vpop.f32.mrf.mxu0
    %v157 = vadd.f32 %v128, %v156
    %v158 = vpop.f32.mrf.mxu0
    %v159 = vadd.f32 %v130, %v158
    %160 = vdwg.mxu0
    %v161 = vld [vmem:[%s4] sm:$0x1]
    %v163 = vperm.slane %v161, 0
    %v165 = vadd.f32 %v157, %v163
    %v166 = vadd.f32 %v159, %v163
    %v167 = vxor.u32 %v165, 2147483648
    %v168 = vxor.u32 %v166, 2147483648
    %v169 = vmul.f32 %v167, 1.442695
    %v170 = vpow.pop %v169
    %v171 = vmul.f32 %v168, 1.442695
    %v172 = vpow.pop %v171
    %v173 = vadd.f32 %v170, 1.0
    %v174 = vadd.f32 %v172, 1.0
    %v175 = vrcp.pop %v173
    %v176 = vmul.f32 %v173, %v175
    %v177 = vsub.f32 1.0, %v176
    %v178 = vmul.f32 %v175, %v177
    %v179 = vadd.f32 %v175, %v178
    %vm180 = vweird.f32 %v173
    %vm181 = vweird.f32 %v175
    %vm182 = vmor %vm180, %vm181
    %v183 = vsel %vm182, %v175, %v179
    %v184 = vand.u32 2147483647, %v173
    %vm185 = vcmp.eq.f32.partialorder %v184, 8.507059e+37
    %v186 = vand.u32 %v173, 2147483648
    %v187 = vor.u32 1.1754944e-38, %v186
    %v188 = vsel %vm185, %v187, %v183
    %v189 = vmul.f32 1.0, %v188
    %v190 = vrcp.pop %v174
    %v191 = vmul.f32 %v174, %v190
    %v192 = vsub.f32 1.0, %v191
    %v193 = vmul.f32 %v190, %v192
    %v194 = vadd.f32 %v190, %v193
    %vm195 = vweird.f32 %v174
    %vm196 = vweird.f32 %v190
    %vm197 = vmor %vm195, %vm196
    %v198 = vsel %vm197, %v190, %v194
    %v199 = vand.u32 2147483647, %v174
    %vm200 = vcmp.eq.f32.partialorder %v199, 8.507059e+37
    %v201 = vand.u32 %v174, 2147483648
    %v202 = vor.u32 1.1754944e-38, %v201
    %v203 = vsel %vm200, %v202, %v198
    %v204 = vmul.f32 1.0, %v203
    %v205 = vtanh.pop %v165
    %v206 = vtanh.pop %v166
    %v207 = vld [vmem:[#allocation7] sm:$0xff]
    %v208 = vld [vmem:[#allocation7 + $0x8] sm:$0xff]
    %v209 = vmul.f32 %v189, %v207
    %v210 = vmul.f32 %v204, %v208
    %213 = vrot.lane.b32.xlu0 %v205, 64
    %v214 = vpop.permute.xlu0 %213
    %215 = vrot.lane.b32.xlu0 %v206, 64
    %v216 = vpop.permute.xlu0 %215
    %v219 = vmul.f32 %v189, %v214
    %v220 = vmul.f32 %v204, %v216
    %223 = vrot.lane.b32.xlu0 %v219, 96
    %v224 = vpop.permute.xlu0 %223
    %225 = vrot.lane.b32.xlu0 %v220, 96
    %v226 = vpop.permute.xlu0 %225
    %v229 = vadd.f32 %v209, %v224
    %v230 = vadd.f32 %v210, %v226
    %v231 = vtanh.pop %v229
    %v232 = vtanh.pop %v230
    %235 = vrot.lane.b32.xlu0 %v231, 64
    %v236 = vpop.permute.xlu0 %235
    %237 = vrot.lane.b32.xlu0 %v232, 64
    %v238 = vpop.permute.xlu0 %237
    %v241 = vmul.f32 %v189, %v236
    %v242 = vmul.f32 %v204, %v238
    %245 = vrot.lane.b32.xlu0 %v241, 64
    %v246 = vpop.permute.xlu0 %245
    %247 = vrot.lane.b32.xlu0 %v242, 64
    %v248 = vpop.permute.xlu0 %247
    %251 = vst.msk [vmem:[#allocation10] sm:$0xff] %vm114, %v246
    %252 = vst.msk [vmem:[#allocation10 + $0x8] sm:$0xff] %vm114, %v248
    %253 = vst.msk [vmem:[#allocation11] sm:$0xff] %vm114, %v229
    %254 = vst.msk [vmem:[#allocation11 + $0x8] sm:$0xff] %vm114, %v230
    // Predicated region
    $region38: #{tpu_custom_call.1} parent=1 // pred_check
      _
    $region39: #{tpu_custom_call.1} parent=1 // pred_check_branch
      %256 = sbr.rel (0) target = $region41
    $region40: #{tpu_custom_call.1} parent=1 // pred_region
      %258 = vsyncadd [#allocation4], 0
      %s259 = sshll.u32 [#allocation10], 4
      %s260 = int_to_ptr.vmem [resolvable:$true] %s259
      %s261 = sshll.u32 %s5, 4
      %s262 = int_to_ptr.hbm [resolvable:$true] %s261
      %267 = dma.vmem_to_hbm [thread:$0]  %s260, 256, %s262, [#allocation4], 128, 128, 8
    $region41: #{tpu_custom_call.1} parent=1 // pred_fallthru
      _
    // Predicated region
    $region42: #{tpu_custom_call.1} parent=1 // pred_check
      _
    $region43: #{tpu_custom_call.1} parent=1 // pred_check_branch
      %269 = sbr.rel (0) target = $region45
    $region44: #{tpu_custom_call.1} parent=1 // pred_region
      %271 = vsyncadd [#allocation12], 0
      %s272 = sshll.u32 [#allocation11], 4
      %s273 = int_to_ptr.vmem [resolvable:$true] %s272
      %s274 = sshll.u32 %s6, 4
      %s275 = int_to_ptr.hbm [resolvable:$true] %s274
      %280 = dma.vmem_to_hbm [thread:$0]  %s273, 256, %s275, [#allocation12], 128, 128, 8
    $region45: #{tpu_custom_call.1} parent=1 // pred_fallthru
      _
    // Predicated region
    $region46: #{tpu_custom_call.1} parent=1 // pred_check
      _
    $region47: #{tpu_custom_call.1} parent=1 // pred_check_branch
      %282 = sbr.rel (0) target = $region49
    $region48: #{tpu_custom_call.1} parent=1 // pred_region
      %284 = dma.done [#allocation4], 256
    $region49: #{tpu_custom_call.1} parent=1 // pred_fallthru
      _
    // Predicated region
    $region50: #{tpu_custom_call.1} parent=1 // pred_check
      _
    $region51: #{tpu_custom_call.1} parent=1 // pred_check_branch
      %286 = sbr.rel (0) target = $region53
    $region52: #{tpu_custom_call.1} parent=1 // pred_region
      %288 = dma.done [#allocation12], 256
    $region53: #{tpu_custom_call.1} parent=1 // pred_fallthru
      _
    %289 = vsyncpa [#allocation3], 1
    %290 = vsyncpa [#allocation6], 1
    %291 = vsyncpa [#allocation9], 1
    %292 = vsyncpa [#allocation4], 1
    %293 = vsyncpa [#allocation12], 1

</llo_original>
